<compile_context>
chip_gen: v5e
topology: v5e:2x2
jax: 0.10.0
libtpu: 0.0.40
codegen_flags: <defaults>
</compile_context>

<pallas_src>
import functools

import jax
import jax.numpy as jnp
from jax.experimental import pallas as pl
from jax.experimental.pallas import tpu as pltpu

HIDDEN = 512  # fixed by the module (fc1 out_channels)


def _channel_attention_kernel(x_ref, w1t_ref, w2t_ref, o_ref, sum_acc, max_acc,
                              *, true_t, ragged, n_slices):
    # x_ref:   (b_tile, C, t_tile)   input tile (any float dtype)
    # w1t_ref: (C, HIDDEN)           (= fc1.weight[:, :, 0].T)
    # w2t_ref: (HIDDEN, C)           (= fc2.weight[:, :, 0].T)
    # o_ref:   (b_tile, C)           output gate
    # sum_acc, max_acc: (b_tile, C) f32 running accumulators (VMEM scratch)
    t = pl.program_id(1)
    n_t = pl.num_programs(1)
    b_tile, _, t_tile = x_ref.shape

    @pl.when(t == 0)
    def _init():
        sum_acc[...] = jnp.zeros(sum_acc.shape, sum_acc.dtype)
        max_acc[...] = jnp.full(max_acc.shape, -jnp.inf, max_acc.dtype)

    def accumulate(mask_tail):
        x = x_ref[...].astype(jnp.float32)                     # (b_tile, C, t_tile)
        if mask_tail:
            # Partial last block: positions >= true_t hold unspecified data, so mask
            # the sum contribution to 0 and the max contribution to -inf.
            pos = t * t_tile + jax.lax.broadcasted_iota(jnp.int32, (1, 1, t_tile), 2)
            valid = pos < true_t
            x_sum = jnp.where(valid, x, 0.0)
            x_max = jnp.where(valid, x, -jnp.inf)
        else:
            x_sum = x
            x_max = x
        # VPU pre-combine of the 128-lane slices; only one small XLU reduce per
        # accumulator per step (instead of a full t_tile-wide reduce).
        if n_slices > 1:
            s_pre = x_sum[..., 0:128]
            m_pre = x_max[..., 0:128]
            for i in range(1, n_slices):
                sl = slice(i * 128, (i + 1) * 128)
                s_pre = s_pre + x_sum[..., sl]
                m_pre = jnp.maximum(m_pre, x_max[..., sl])
        else:
            s_pre, m_pre = x_sum, x_max
        sum_acc[...] += jnp.sum(s_pre, axis=-1)                # (b_tile, C)
        max_acc[...] = jnp.maximum(max_acc[...], jnp.max(m_pre, axis=-1))

    if ragged:
        @pl.when(t < n_t - 1)
        def _full_tiles():
            accumulate(mask_tail=False)

        @pl.when(t == n_t - 1)
        def _last_tile():
            accumulate(mask_tail=True)
    else:
        accumulate(mask_tail=False)

    @pl.when(t == n_t - 1)
    def _finalize():
        avg_p = sum_acc[...] * (1.0 / true_t)                  # true T, not padded T
        max_p = max_acc[...]
        # Fuse avg/max branches: one (2*b_tile, C) @ (C, HIDDEN) @ (HIDDEN, C) pass.
        p = jnp.concatenate([avg_p, max_p], axis=0).astype(w1t_ref.dtype)
        h = jnp.dot(p, w1t_ref[...], preferred_element_type=jnp.float32)
        h = jnp.maximum(h, 0.0).astype(w2t_ref.dtype)          # ReLU
        y = jnp.dot(h, w2t_ref[...], preferred_element_type=jnp.float32)
        out = y[:b_tile] + y[b_tile:]                          # (b_tile, C)
        o_ref[...] = jax.nn.sigmoid(out).astype(o_ref.dtype)


def channel_attention(x, w1, w2, *, b_tile=None, t_tile=None, weight_dtype=None,
                      vmem_limit_bytes=None):
    """ChannelAttention forward.

    x:  (B, C, T) float32/bfloat16
    w1: (HIDDEN, C, 1)  fc1.weight
    w2: (C, HIDDEN, 1)  fc2.weight
    Returns (B, C, 1) with x.dtype (bf16 input -> bf16 gate).

    Tuning knobs for real ECAPA shapes (e.g. B=32, C=1536, T~1000):
      - t_tile: lane-axis tile, multiple of 128 (default min(T, 256): fits every
        generation once vmem_limit_bytes is raised, including v7x's 64 MiB VMEM).
      - b_tile: batch tile (default 8 when divisible -> megacore-friendly on v7x).
      - weight_dtype=jnp.bfloat16 halves resident weight VMEM on tight chips.
      - vmem_limit_bytes: auto-computed from the tiles when None.
    """
    B, C, T = x.shape
    hidden = w1.shape[0]
    w1t = jnp.transpose(w1[:, :, 0])                           # (C, HIDDEN)
    w2t = jnp.transpose(w2[:, :, 0])                           # (HIDDEN, C)
    if weight_dtype is not None:
        w1t = w1t.astype(weight_dtype)
        w2t = w2t.astype(weight_dtype)

    # ---- tile selection (respect the (8, 128) block constraint) ----
    if t_tile is None:
        t_tile = T if T <= 256 else 256
    if t_tile != T and t_tile % 128 != 0:
        t_tile = T                                             # fall back to full extent
    t_tile = min(t_tile, T)
    if b_tile is None:
        b_tile = 8 if (B > 8 and B % 8 == 0) else B
    if B % b_tile != 0 or (b_tile != B and b_tile % 8 != 0):
        b_tile = B                                             # fall back to full batch

    n_t = pl.cdiv(T, t_tile)                                   # ragged grid, no jnp.pad
    ragged = (T % t_tile) != 0
    n_slices = t_tile // 128 if (t_tile % 128 == 0) else 1

    # ---- auto VMEM budget: 2x x-block + 2x weights + 2x out block + scratch ----
    x_blk_bytes = b_tile * C * t_tile * x.dtype.itemsize
    w_bytes = w1t.size * w1t.dtype.itemsize + w2t.size * w2t.dtype.itemsize
    o_blk_bytes = b_tile * C * x.dtype.itemsize
    scratch_bytes = 2 * b_tile * C * 4
    needed = 2 * x_blk_bytes + 2 * w_bytes + 2 * o_blk_bytes + scratch_bytes
    if vmem_limit_bytes is None:
        vmem_limit_bytes = int(min(64 * 2**20, max(needed + 4 * 2**20, 32 * 2**20)))

    cost = pl.CostEstimate(
        flops=int(2 * B * C * T + 8 * B * C * hidden),         # pooling + tiny MLP
        transcendentals=int(B * C),                            # sigmoid
        bytes_accessed=int(B * C * T * x.dtype.itemsize + w_bytes
                           + B * C * x.dtype.itemsize),
    )

    kernel = functools.partial(_channel_attention_kernel,
                               true_t=T, ragged=ragged, n_slices=n_slices)

    out = pl.pallas_call(
        kernel,
        out_shape=jax.ShapeDtypeStruct((B, C), x.dtype),
        grid_spec=pltpu.PrefetchScalarGridSpec(
            num_scalar_prefetch=0,
            grid=(B // b_tile, n_t),
            in_specs=[
                # x streamed over (batch, time); time is the reduction axis.
                pl.BlockSpec((b_tile, C, t_tile), lambda b, t: (b, 0, t)),
                # weights: constant index_map -> fetched once, stay resident.
                pl.BlockSpec((C, hidden), lambda b, t: (0, 0)),
                pl.BlockSpec((hidden, C), lambda b, t: (0, 0)),
            ],
            # same output block for every t -> accumulator stays resident across T.
            out_specs=pl.BlockSpec((b_tile, C), lambda b, t: (b, 0)),
            scratch_shapes=[
                pltpu.VMEM((b_tile, C), jnp.float32),          # running sum
                pltpu.VMEM((b_tile, C), jnp.float32),          # running max
            ],
        ),
        compiler_params=pltpu.CompilerParams(
            dimension_semantics=("parallel", "arbitrary"),
            vmem_limit_bytes=vmem_limit_bytes,
        ),
        cost_estimate=cost,
    )(x, w1t, w2t)
    return out[:, :, None]                                     # (B, C, 1)


def _reference(x, w1, w2):
    """Pure-JAX reference mirroring the PyTorch module."""
    avg_p = jnp.mean(x, axis=-1)                               # (B, C)
    max_p = jnp.max(x, axis=-1)                                # (B, C)
    w1m = w1[:, :, 0]                                          # (HIDDEN, C)
    w2m = w2[:, :, 0]                                          # (C, HIDDEN)

    def mlp(p):
        return jnp.maximum(p @ w1m.T, 0.0) @ w2m.T             # (B, C)

    return jax.nn.sigmoid(mlp(avg_p) + mlp(max_p))[:, :, None]


if __name__ == "__main__":
    key = jax.random.PRNGKey(0)
    k_x, k_w1, k_w2, k_x2, k_x3 = jax.random.split(key, 5)

    # Small shapes consistent with the module: channels=C, length=T, hidden fixed 512.
    B, C, T = 2, 4, 16
    x = jax.random.normal(k_x, (B, C, T), dtype=jnp.float32)
    w1 = jax.random.normal(k_w1, (HIDDEN, C, 1), dtype=jnp.float32) * (1.0 / (C ** 0.5))
    w2 = jax.random.normal(k_w2, (C, HIDDEN, 1), dtype=jnp.float32) * (1.0 / (HIDDEN ** 0.5))

    out = jax.block_until_ready(channel_attention(x, w1, w2))
    ref = _reference(x, w1, w2)
    assert out.shape == (B, C, 1), out.shape
    assert jnp.allclose(out, ref, atol=1e-5, rtol=1e-5), (
        f"max abs err = {jnp.max(jnp.abs(out - ref))}")

    # Exercises the tiled-T accumulator path, batch tiling (2 parallel batch blocks),
    # and the in-kernel ragged-tail mask (T=300 with t_tile=128 -> partial last block).
    B2, T2 = 16, 300
    x2 = jax.random.normal(k_x2, (B2, C, T2), dtype=jnp.float32)
    out2 = jax.block_until_ready(channel_attention(x2, w1, w2, b_tile=8, t_tile=128))
    ref2 = _reference(x2, w1, w2)
    assert out2.shape == (B2, C, 1), out2.shape
    assert jnp.allclose(out2, ref2, atol=1e-5, rtol=1e-5), (
        f"max abs err = {jnp.max(jnp.abs(out2 - ref2))}")

    # Exercises the VPU pre-combine path (t_tile=256 -> 2 lane slices) plus a ragged
    # tail with only 8 valid lanes in the last block.
    B3, T3 = 8, 520
    x3 = jax.random.normal(k_x3, (B3, C, T3), dtype=jnp.float32)
    out3 = jax.block_until_ready(channel_attention(x3, w1, w2, b_tile=8, t_tile=256))
    ref3 = _reference(x3, w1, w2)
    assert out3.shape == (B3, C, 1), out3.shape
    assert jnp.allclose(out3, ref3, atol=1e-5, rtol=1e-5), (
        f"max abs err = {jnp.max(jnp.abs(out3 - ref3))}")

    print("KERNEL_OK")
</pallas_src>

<mosaic_0001>
module attributes {stable_mosaic.version = 11 : i64} {
  func.func @_channel_attention_kernel(%arg0: i32, %arg1: i32, %arg2: memref<2x4x16xf32, #tpu.memory_space<vmem>>, %arg3: memref<4x512xf32, #tpu.memory_space<vmem>>, %arg4: memref<512x4xf32, #tpu.memory_space<vmem>>, %arg5: memref<2x4xf32, #tpu.memory_space<vmem>>, %arg6: memref<2x4xf32, #tpu.memory_space<vmem>>, %arg7: memref<2x4xf32, #tpu.memory_space<vmem>>) attributes {dimension_semantics = [#tpu.dimension_semantics<parallel>, #tpu.dimension_semantics<arbitrary>], iteration_bounds = array<i64: 1, 1>, scalar_prefetch = 0 : i64, scratch_operands = 2 : i64, tpu.core_type = #tpu.core_type<tc>, window_params = [{transform_indices = @transform_0, window_bounds = array<i64: 2, 4, 16>}, {pipeline_mode = #tpu.pipeline_mode<synchronous>, transform_indices = @transform_1, window_bounds = array<i64: 4, 512>}, {pipeline_mode = #tpu.pipeline_mode<synchronous>, transform_indices = @transform_2, window_bounds = array<i64: 512, 4>}, {transform_indices = @transform_3, window_bounds = array<i64: 2, 4>}]} {
    %c0_i32 = arith.constant 0 : i32
    %0 = arith.cmpi eq, %arg1, %c0_i32 : i32
    %1 = arith.extui %0 : i1 to i32
    %c0_i32_0 = arith.constant 0 : i32
    %2 = arith.cmpi ne, %1, %c0_i32_0 : i32
    scf.if %2 {
      %cst_14 = arith.constant 0.000000e+00 : f32
      %15 = vector.broadcast %cst_14 : f32 to vector<2x4xf32>
      %c0_15 = arith.constant 0 : index
      %c0_16 = arith.constant 0 : index
      %16 = vector.load %arg6[%c0_15, %c0_16] : memref<2x4xf32, #tpu.memory_space<vmem>>, vector<2x4xf32>
      tpu.vector_store %arg6[%c0_15, %c0_16], %15 {strides = array<i32>} : memref<2x4xf32, #tpu.memory_space<vmem>>, vector<2x4xf32>,
      %cst_17 = arith.constant 0xFF800000 : f32
      %17 = vector.broadcast %cst_17 : f32 to vector<2x4xf32>
      %c0_18 = arith.constant 0 : index
      %c0_19 = arith.constant 0 : index
      %18 = vector.load %arg7[%c0_18, %c0_19] : memref<2x4xf32, #tpu.memory_space<vmem>>, vector<2x4xf32>
      tpu.vector_store %arg7[%c0_18, %c0_19], %17 {strides = array<i32>} : memref<2x4xf32, #tpu.memory_space<vmem>>, vector<2x4xf32>,
    } else {
    }
    %c0 = arith.constant 0 : index
    %c0_1 = arith.constant 0 : index
    %c0_2 = arith.constant 0 : index
    %3 = vector.load %arg2[%c0, %c0_1, %c0_2] : memref<2x4x16xf32, #tpu.memory_space<vmem>>, vector<2x4x16xf32>
    %c0_3 = arith.constant 0 : index
    %c0_4 = arith.constant 0 : index
    %4 = vector.load %arg6[%c0_3, %c0_4] : memref<2x4xf32, #tpu.memory_space<vmem>>, vector<2x4xf32>
    %cst = arith.constant dense<0.000000e+00> : vector<2x4xf32>
    %5 = vector.multi_reduction <add>, %3, %cst [2] : vector<2x4x16xf32> to vector<2x4xf32>
    %6 = arith.addf %4, %5 : vector<2x4xf32>
    %c0_5 = arith.constant 0 : index
    %c0_6 = arith.constant 0 : index
    %7 = vector.load %arg6[%c0_5, %c0_6] : memref<2x4xf32, #tpu.memory_space<vmem>>, vector<2x4xf32>
    tpu.vector_store %arg6[%c0_5, %c0_6], %6 {strides = array<i32>} : memref<2x4xf32, #tpu.memory_space<vmem>>, vector<2x4xf32>,
    %c0_7 = arith.constant 0 : index
    %c0_8 = arith.constant 0 : index
    %8 = vector.load %arg7[%c0_7, %c0_8] : memref<2x4xf32, #tpu.memory_space<vmem>>, vector<2x4xf32>
    %cst_9 = arith.constant dense<0xFF800000> : vector<2x4xf32>
    %9 = vector.multi_reduction <maximumf>, %3, %cst_9 [2] : vector<2x4x16xf32> to vector<2x4xf32>
    %10 = arith.maximumf %8, %9 : vector<2x4xf32>
    %c0_10 = arith.constant 0 : index
    %c0_11 = arith.constant 0 : index
    %11 = vector.load %arg7[%c0_10, %c0_11] : memref<2x4xf32, #tpu.memory_space<vmem>>, vector<2x4xf32>
    tpu.vector_store %arg7[%c0_10, %c0_11], %10 {strides = array<i32>} : memref<2x4xf32, #tpu.memory_space<vmem>>, vector<2x4xf32>,
    %c0_i32_12 = arith.constant 0 : i32
    %12 = arith.cmpi eq, %arg1, %c0_i32_12 : i32
    %13 = arith.extui %12 : i1 to i32
    %c0_i32_13 = arith.constant 0 : i32
    %14 = arith.cmpi ne, %13, %c0_i32_13 : i32
    scf.if %14 {
      %c0_14 = arith.constant 0 : index
      %c0_15 = arith.constant 0 : index
      %15 = vector.load %arg6[%c0_14, %c0_15] : memref<2x4xf32, #tpu.memory_space<vmem>>, vector<2x4xf32>
      %cst_16 = arith.constant 6.250000e-02 : f32
      %16 = vector.broadcast %cst_16 : f32 to vector<2x4xf32>
      %17 = arith.mulf %15, %16 : vector<2x4xf32>
      %c0_17 = arith.constant 0 : index
      %c0_18 = arith.constant 0 : index
      %18 = vector.load %arg7[%c0_17, %c0_18] : memref<2x4xf32, #tpu.memory_space<vmem>>, vector<2x4xf32>
      %19 = tpu.concatenate %17, %18 in 0 : vector<2x4xf32>, vector<2x4xf32> -> vector<4x4xf32>
      %c0_19 = arith.constant 0 : index
      %c0_20 = arith.constant 0 : index
      %20 = vector.load %arg3[%c0_19, %c0_20] : memref<4x512xf32, #tpu.memory_space<vmem>>, vector<4x512xf32>
      %cst_21 = arith.constant dense<0.000000e+00> : vector<4x512xf32>
      %21 = tpu.matmul %19, %20, %cst_21 {dimension_numbers = #tpu.dot_dimension_numbers<[1], [0], [0], [1], [0, 0, 1, 1], [], []>} : vector<4x4xf32>, vector<4x512xf32>, vector<4x512xf32> -> vector<4x512xf32>
      %cst_22 = arith.constant 0.000000e+00 : f32
      %22 = vector.broadcast %cst_22 : f32 to vector<4x512xf32>
      %23 = arith.maximumf %21, %22 : vector<4x512xf32>
      %c0_23 = arith.constant 0 : index
      %c0_24 = arith.constant 0 : index
      %24 = vector.load %arg4[%c0_23, %c0_24] : memref<512x4xf32, #tpu.memory_space<vmem>>, vector<512x4xf32>
      %cst_25 = arith.constant dense<0.000000e+00> : vector<4x4xf32>
      %25 = tpu.matmul %23, %24, %cst_25 {dimension_numbers = #tpu.dot_dimension_numbers<[1], [0], [0], [1], [0, 0, 1, 1], [], []>} : vector<4x512xf32>, vector<512x4xf32>, vector<4x4xf32> -> vector<4x4xf32>
      %26 = vector.extract_strided_slice %25 {offsets = [0, 0], sizes = [2, 4], strides = [1, 1]} : vector<4x4xf32> to vector<2x4xf32>
      %27 = vector.extract_strided_slice %25 {offsets = [2, 0], sizes = [2, 4], strides = [1, 1]} : vector<4x4xf32> to vector<2x4xf32>
      %28 = arith.addf %26, %27 : vector<2x4xf32>
      %29 = arith.negf %28 : vector<2x4xf32>
      %30 = math.exp %29 : vector<2x4xf32>
      %cst_26 = arith.constant 1.000000e+00 : f32
      %31 = vector.broadcast %cst_26 : f32 to vector<2x4xf32>
      %32 = arith.addf %31, %30 : vector<2x4xf32>
      %33 = arith.divf %31, %32 : vector<2x4xf32>
      %c0_27 = arith.constant 0 : index
      %c0_28 = arith.constant 0 : index
      %34 = vector.load %arg5[%c0_27, %c0_28] : memref<2x4xf32, #tpu.memory_space<vmem>>, vector<2x4xf32>
      tpu.vector_store %arg5[%c0_27, %c0_28], %33 {strides = array<i32>} : memref<2x4xf32, #tpu.memory_space<vmem>>, vector<2x4xf32>,
    } else {
    }
    return
  }
  func.func @transform_0(%arg0: i32, %arg1: i32) -> (i32, i32, i32) {
    %c0_i32 = arith.constant 0 : i32
    %c0_i32_0 = arith.constant 0 : i32
    return %arg0, %c0_i32, %arg1 : i32, i32, i32
  }
  func.func @transform_1(%arg0: i32, %arg1: i32) -> (i32, i32) {
    %c0_i32 = arith.constant 0 : i32
    %c0_i32_0 = arith.constant 0 : i32
    %c0_i32_1 = arith.constant 0 : i32
    return %c0_i32, %c0_i32_0 : i32, i32
  }
  func.func @transform_2(%arg0: i32, %arg1: i32) -> (i32, i32) {
    %c0_i32 = arith.constant 0 : i32
    %c0_i32_0 = arith.constant 0 : i32
    %c0_i32_1 = arith.constant 0 : i32
    return %c0_i32, %c0_i32_0 : i32, i32
  }
  func.func @transform_3(%arg0: i32, %arg1: i32) -> (i32, i32) {
    %c0_i32 = arith.constant 0 : i32
    %c0_i32_0 = arith.constant 0 : i32
    return %arg0, %c0_i32 : i32, i32
  }
}

</mosaic_0001>

<llo_original>
// kernel: tpu_custom_call.1
$region0: #{tpu_custom_call.1}
  #allocation0 [shape = 'u32[]', space=smem, size = 0x4, offset = 0x4, fixed_abs, tag = 'smem constant byte address 0x4 - core index']
  #allocation1 [shape = 'u32[72,128]{1,0:T(1,128)}', space=vmem, size = 0x9000, scoped, tag = 'internal scratch']
  #allocation2 [shape = 'f32[2,4]{1,0:T(2,128)}', space=vmem, size = 0x400, scoped, tag = 'scratch operand']
  #allocation3 [shape = 'f32[2,4]{1,0:T(2,128)}', space=vmem, size = 0x400, scoped, tag = 'scratch operand']
  %s0 = inlined_call_operand.vmem [shape: f32[2,4,16], index: 0, kind: input, shape index: {}]
  %s1 = inlined_call_operand.vmem [shape: f32[4,512], index: 1, kind: input, shape index: {}]
  %s2 = inlined_call_operand.vmem [shape: f32[512,4], index: 2, kind: input, shape index: {}]
  %s3 = inlined_call_operand.hbm [shape: f32[2,4], index: 3, kind: output, shape index: {}]
  %s4 = sld [smem:[#allocation0]]
  $region30: #{tpu_custom_call.1} parent=0
    _
  %s6 = ssub.s32 1, %s4
  %s7 = scalar_select 0, %s6, %s4
  $region1: #{tpu_custom_call.1} parent=0
    #allocation4 [shape = 'u8[1024]{0}', space=vmem, size = 0x400, scoped, tag = 'output window, operand 0, single buffered']
    #allocation5 [shape = 's32[1]{0}', space=sflag, size = 0x4, scoped, tag = 'scoped memory for tpu_custom_call.1']
    %8 = vsyncpa [#allocation5], 0
    // Predicated region
    $region2: #{tpu_custom_call.1} parent=1 // pred_check
      _
    $region3: #{tpu_custom_call.1} parent=1 // pred_check_branch
      %10 = sbr.rel (0) target = $region5
    $region4: #{tpu_custom_call.1} parent=1 // pred_region
      _
    $region5: #{tpu_custom_call.1} parent=1 // pred_fallthru
      _
    // Predicated region
    $region6: #{tpu_custom_call.1} parent=1 // pred_check
      _
    $region7: #{tpu_custom_call.1} parent=1 // pred_check_branch
      %12 = sbr.rel (0) target = $region9
    $region8: #{tpu_custom_call.1} parent=1 // pred_region
      _
    $region9: #{tpu_custom_call.1} parent=1 // pred_fallthru
      _
    // Predicated region
    $region10: #{tpu_custom_call.1} parent=1 // pred_check
      _
    $region11: #{tpu_custom_call.1} parent=1 // pred_check_branch
      %14 = sbr.rel (0) target = $region13
    $region12: #{tpu_custom_call.1} parent=1 // pred_region
      _
    $region13: #{tpu_custom_call.1} parent=1 // pred_fallthru
      _
    %p15 = scmp.eq.s32.totalorder 0, 0
    // Predicated region
    $region14: #{tpu_custom_call.1} parent=1 // pred_check
      %p16 = pneg %p15
    $region15: #{tpu_custom_call.1} parent=1 // pred_check_branch
      %18 = sbr.rel (%p16) target = $region17
    $region16: #{tpu_custom_call.1} parent=1 // pred_region
      %vm19 = vcmask 25600
      %20 = vst.msk [vmem:[#allocation2] sm:$0x3] %vm19, 0.0
      %21 = vst.msk [vmem:[#allocation3] sm:$0x3] %vm19, -inf
    $region17: #{tpu_custom_call.1} parent=1 // pred_fallthru
      _
    %v22 = vld [vmem:[%s0] sm:$0xf]
    %v23 = vld [vmem:[%s0 + $0x4] sm:$0xf]
    %v24 = vld [vmem:[#allocation2] sm:$0x3]
    %vm25 = vcmask 125952
    %v26 = vsel %vm25, %v22, 0.0
    %27 = vadd.xlane.f32.xlu0 %v26
    %v28 = vpop.xlane.xlu0 %27
    %v29 = vsel %vm25, %v23, 0.0
    %30 = vadd.xlane.f32.xlu0 %v29
    %v31 = vpop.xlane.xlu0 %30
    %v34 = vlaneseq
    %v35 = vand.u32 %v34, 127
    %v36 = vperm.slane %v28, %v35
    %v37 = vperm.slane %v31, %v35
    %vm38 = vcmask 1041409
    %v39 = vsel %vm38, %v37, %v36
    %v41 = vadd.f32 %v24, %v39
    %vm42 = vcmask 25600
    %43 = vst.msk [vmem:[#allocation2] sm:$0x3] %vm42, %v41
    %v44 = vld [vmem:[#allocation3] sm:$0x3]
    %v45 = vsel %vm25, %v22, -inf
    %46 = vmax.xlane.f32.xlu0 %v45
    %v47 = vpop.xlane.xlu0 %46
    %v48 = vsel %vm25, %v23, -inf
    %49 = vmax.xlane.f32.xlu0 %v48
    %v50 = vpop.xlane.xlu0 %49
    %v53 = vperm.slane %v47, %v35
    %v54 = vperm.slane %v50, %v35
    %v55 = vsel %vm38, %v54, %v53
    %v57 = vmax.f32 %v44, %v55
    %58 = vst.msk [vmem:[#allocation3] sm:$0x3] %vm42, %v57
    // Predicated region
    $region18: #{tpu_custom_call.1} parent=1 // pred_check
      %p59 = pneg %p15
    $region19: #{tpu_custom_call.1} parent=1 // pred_check_branch
      %61 = sbr.rel (%p59) target = $region21
    $region20: #{tpu_custom_call.1} parent=1 // pred_region
      %v62 = vld [vmem:[#allocation2] sm:$0x3]
      %v63 = vmul.f32 %v62, 0.0625
      %v64 = vld [vmem:[#allocation3] sm:$0x3]
      %v66 = vrot.slane %v64, 6
      %vm68 = vcmask 1041408
      %v69 = vsel %vm68, %v63, %v66
      %v70 = vld [vmem:[%s1] sm:$0xff]
      %v71 = vld [vmem:[%s1 + $0x8] sm:$0xff]
      %74 = vst [vmem:[#allocation1] ss:$2 sm:$0xff] %v70
      %s75 = scalar_lea.vmem [#allocation1], 16
      %76 = vst [vmem:[%s75] ss:$2 sm:$0xff] %v71
      %v77 = vld.sshfl [vmem:[#allocation1] sm:$0xff pattern:$0x75316420]
      %v78 = vld.sshfl [vmem:[#allocation1 + $0x8] sm:$0xff pattern:$0x75316420]
      %v79 = vld.sshfl [vmem:[#allocation1 + $0x10] sm:$0xff pattern:$0x75316420]
      %v80 = vld.sshfl [vmem:[#allocation1 + $0x18] sm:$0xff pattern:$0x75316420]
      %vm81 = vcmask 31744
      %v83 = vsel %vm81, %v69, 0
      %vm85 = vcmask 1043456
      %v86 = vsel %vm85, %v77, 0
      %v88 = vsel %vm85, %v78, 0
      %v90 = vsel %vm85, %v79, 0
      %v92 = vsel %vm85, %v80, 0
      %94 = vmatpush.msra.mxu0 0.0
      %95 = vmatpush.msra.mxu0 0.0
      %96 = vmatpush.msra.mxu0 0.0
      %97 = vmatpush.msra.mxu0 0.0
      %98 = vmatpush.msra.mxu0 0.0
      %99 = vmatpush.msra.mxu0 0.0
      %100 = vmatpush.msra.mxu0 0.0
      %101 = vmatpush.msra.mxu0 0.0
      %102 = vmatpush.msra.mxu0 0.0
      %103 = vmatpush.msra.mxu0 0.0
      %104 = vmatpush.msra.mxu0 0.0
      %105 = vmatpush.msra.mxu0 0.0
      %106 = vmatpush.msra.mxu0 0.0
      %107 = vmatpush.msra.mxu0 0.0
      %108 = vmatpush.msra.mxu0 0.0
      %109 = vmatpush.msra.mxu0 %v86
      %110 = vmatmul.f32.gmra.mxu0 %v83
      %v111 = vpop.f32.mrf.mxu0
      %v112 = vadd.f32 0.0, %v111
      %113 = vdwg.mxu0
      %114 = vmatpush.msra.mxu0 0.0
      %115 = vmatpush.msra.mxu0 0.0
      %116 = vmatpush.msra.mxu0 0.0
      %117 = vmatpush.msra.mxu0 0.0
      %118 = vmatpush.msra.mxu0 0.0
      %119 = vmatpush.msra.mxu0 0.0
      %120 = vmatpush.msra.mxu0 0.0
      %121 = vmatpush.msra.mxu0 0.0
      %122 = vmatpush.msra.mxu0 0.0
      %123 = vmatpush.msra.mxu0 0.0
      %124 = vmatpush.msra.mxu0 0.0
      %125 = vmatpush.msra.mxu0 0.0
      %126 = vmatpush.msra.mxu0 0.0
      %127 = vmatpush.msra.mxu0 0.0
      %128 = vmatpush.msra.mxu0 0.0
      %129 = vmatpush.msra.mxu0 %v88
      %130 = vmatmul.f32.gmra.mxu0 %v83
      %v131 = vpop.f32.mrf.mxu0
      %v132 = vadd.f32 0.0, %v131
      %133 = vdwg.mxu0
      %134 = vmatpush.msra.mxu0 0.0
      %135 = vmatpush.msra.mxu0 0.0
      %136 = vmatpush.msra.mxu0 0.0
      %137 = vmatpush.msra.mxu0 0.0
      %138 = vmatpush.msra.mxu0 0.0
      %139 = vmatpush.msra.mxu0 0.0
      %140 = vmatpush.msra.mxu0 0.0
      %141 = vmatpush.msra.mxu0 0.0
      %142 = vmatpush.msra.mxu0 0.0
      %143 = vmatpush.msra.mxu0 0.0
      %144 = vmatpush.msra.mxu0 0.0
      %145 = vmatpush.msra.mxu0 0.0
      %146 = vmatpush.msra.mxu0 0.0
      %147 = vmatpush.msra.mxu0 0.0
      %148 = vmatpush.msra.mxu0 0.0
      %149 = vmatpush.msra.mxu0 %v90
      %150 = vmatmul.f32.gmra.mxu0 %v83
      %v151 = vpop.f32.mrf.mxu0
      %v152 = vadd.f32 0.0, %v151
      %153 = vdwg.mxu0
      %154 = vmatpush.msra.mxu0 0.0
      %155 = vmatpush.msra.mxu0 0.0
      %156 = vmatpush.msra.mxu0 0.0
      %157 = vmatpush.msra.mxu0 0.0
      %158 = vmatpush.msra.mxu0 0.0
      %159 = vmatpush.msra.mxu0 0.0
      %160 = vmatpush.msra.mxu0 0.0
      %161 = vmatpush.msra.mxu0 0.0
      %162 = vmatpush.msra.mxu0 0.0
      %163 = vmatpush.msra.mxu0 0.0
      %164 = vmatpush.msra.mxu0 0.0
      %165 = vmatpush.msra.mxu0 0.0
      %166 = vmatpush.msra.mxu0 0.0
      %167 = vmatpush.msra.mxu0 0.0
      %168 = vmatpush.msra.mxu0 0.0
      %169 = vmatpush.msra.mxu0 %v92
      %170 = vmatmul.f32.gmra.mxu0 %v83
      %v171 = vpop.f32.mrf.mxu0
      %v172 = vadd.f32 0.0, %v171
      %173 = vdwg.mxu0
      %v174 = vmax.f32 %v112, 0.0
      %v175 = vmax.f32 %v132, 0.0
      %v176 = vmax.f32 %v152, 0.0
      %v177 = vmax.f32 %v172, 0.0
      %v178 = vld [vmem:[%s2] sm:$0xff]
      %v179 = vld [vmem:[%s2 + $0x8] sm:$0xff]
      %v180 = vld [vmem:[%s2 + $0x10] sm:$0xff]
      %v181 = vld [vmem:[%s2 + $0x18] sm:$0xff]
      %v182 = vld [vmem:[%s2 + $0x20] sm:$0xff]
      %v183 = vld [vmem:[%s2 + $0x28] sm:$0xff]
      %v184 = vld [vmem:[%s2 + $0x30] sm:$0xff]
      %v185 = vld [vmem:[%s2 + $0x38] sm:$0xff]
      %v186 = vld [vmem:[%s2 + $0x40] sm:$0xff]
      %v187 = vld [vmem:[%s2 + $0x48] sm:$0xff]
      %v188 = vld [vmem:[%s2 + $0x50] sm:$0xff]
      %v189 = vld [vmem:[%s2 + $0x58] sm:$0xff]
      %v190 = vld [vmem:[%s2 + $0x60] sm:$0xff]
      %v191 = vld [vmem:[%s2 + $0x68] sm:$0xff]
      %v192 = vld [vmem:[%s2 + $0x70] sm:$0xff]
      %v193 = vld [vmem:[%s2 + $0x78] sm:$0xff]
      %v194 = vld [vmem:[%s2 + $0x80] sm:$0xff]
      %v195 = vld [vmem:[%s2 + $0x88] sm:$0xff]
      %v196 = vld [vmem:[%s2 + $0x90] sm:$0xff]
      %v197 = vld [vmem:[%s2 + $0x98] sm:$0xff]
      %v198 = vld [vmem:[%s2 + $0xa0] sm:$0xff]
      %v199 = vld [vmem:[%s2 + $0xa8] sm:$0xff]
      %v200 = vld [vmem:[%s2 + $0xb0] sm:$0xff]
      %v201 = vld [vmem:[%s2 + $0xb8] sm:$0xff]
      %v202 = vld [vmem:[%s2 + $0xc0] sm:$0xff]
      %v203 = vld [vmem:[%s2 + $0xc8] sm:$0xff]
      %v204 = vld [vmem:[%s2 + $0xd0] sm:$0xff]
      %v205 = vld [vmem:[%s2 + $0xd8] sm:$0xff]
      %v206 = vld [vmem:[%s2 + $0xe0] sm:$0xff]
      %v207 = vld [vmem:[%s2 + $0xe8] sm:$0xff]
      %v208 = vld [vmem:[%s2 + $0xf0] sm:$0xff]
      %v209 = vld [vmem:[%s2 + $0xf8] sm:$0xff]
      %v210 = vld [vmem:[%s2 + $0x100] sm:$0xff]
      %v211 = vld [vmem:[%s2 + $0x108] sm:$0xff]
      %v212 = vld [vmem:[%s2 + $0x110] sm:$0xff]
      %v213 = vld [vmem:[%s2 + $0x118] sm:$0xff]
      %v214 = vld [vmem:[%s2 + $0x120] sm:$0xff]
      %v215 = vld [vmem:[%s2 + $0x128] sm:$0xff]
      %v216 = vld [vmem:[%s2 + $0x130] sm:$0xff]
      %v217 = vld [vmem:[%s2 + $0x138] sm:$0xff]
      %v218 = vld [vmem:[%s2 + $0x140] sm:$0xff]
      %v219 = vld [vmem:[%s2 + $0x148] sm:$0xff]
      %v220 = vld [vmem:[%s2 + $0x150] sm:$0xff]
      %v221 = vld [vmem:[%s2 + $0x158] sm:$0xff]
      %v222 = vld [vmem:[%s2 + $0x160] sm:$0xff]
      %v223 = vld [vmem:[%s2 + $0x168] sm:$0xff]
      %v224 = vld [vmem:[%s2 + $0x170] sm:$0xff]
      %v225 = vld [vmem:[%s2 + $0x178] sm:$0xff]
      %v226 = vld [vmem:[%s2 + $0x180] sm:$0xff]
      %v227 = vld [vmem:[%s2 + $0x188] sm:$0xff]
      %v228 = vld [vmem:[%s2 + $0x190] sm:$0xff]
      %v229 = vld [vmem:[%s2 + $0x198] sm:$0xff]
      %v230 = vld [vmem:[%s2 + $0x1a0] sm:$0xff]
      %v231 = vld [vmem:[%s2 + $0x1a8] sm:$0xff]
      %v232 = vld [vmem:[%s2 + $0x1b0] sm:$0xff]
      %v233 = vld [vmem:[%s2 + $0x1b8] sm:$0xff]
      %v234 = vld [vmem:[%s2 + $0x1c0] sm:$0xff]
      %v235 = vld [vmem:[%s2 + $0x1c8] sm:$0xff]
      %v236 = vld [vmem:[%s2 + $0x1d0] sm:$0xff]
      %v237 = vld [vmem:[%s2 + $0x1d8] sm:$0xff]
      %v238 = vld [vmem:[%s2 + $0x1e0] sm:$0xff]
      %v239 = vld [vmem:[%s2 + $0x1e8] sm:$0xff]
      %v240 = vld [vmem:[%s2 + $0x1f0] sm:$0xff]
      %v241 = vld [vmem:[%s2 + $0x1f8] sm:$0xff]
      %242 = vmatpush.msra.mxu0 %v193
      %243 = vmatpush.msra.mxu0 %v192
      %244 = vmatpush.msra.mxu0 %v191
      %245 = vmatpush.msra.mxu0 %v190
      %246 = vmatpush.msra.mxu0 %v189
      %247 = vmatpush.msra.mxu0 %v188
      %248 = vmatpush.msra.mxu0 %v187
      %249 = vmatpush.msra.mxu0 %v186
      %250 = vmatpush.msra.mxu0 %v185
      %251 = vmatpush.msra.mxu0 %v184
      %252 = vmatpush.msra.mxu0 %v183
      %253 = vmatpush.msra.mxu0 %v182
      %254 = vmatpush.msra.mxu0 %v181
      %255 = vmatpush.msra.mxu0 %v180
      %256 = vmatpush.msra.mxu0 %v179
      %257 = vmatpush.msra.mxu0 %v178
      %258 = vmatmul.f32.gmra.mxu0 %v174
      %v259 = vpop.f32.mrf.mxu0
      %v260 = vadd.f32 0.0, %v259
      %261 = vdwg.mxu0
      %262 = vmatpush.msra.mxu0 %v209
      %263 = vmatpush.msra.mxu0 %v208
      %264 = vmatpush.msra.mxu0 %v207
      %265 = vmatpush.msra.mxu0 %v206
      %266 = vmatpush.msra.mxu0 %v205
      %267 = vmatpush.msra.mxu0 %v204
      %268 = vmatpush.msra.mxu0 %v203
      %269 = vmatpush.msra.mxu0 %v202
      %270 = vmatpush.msra.mxu0 %v201
      %271 = vmatpush.msra.mxu0 %v200
      %272 = vmatpush.msra.mxu0 %v199
      %273 = vmatpush.msra.mxu0 %v198
      %274 = vmatpush.msra.mxu0 %v197
      %275 = vmatpush.msra.mxu0 %v196
      %276 = vmatpush.msra.mxu0 %v195
      %277 = vmatpush.msra.mxu0 %v194
      %278 = vmatmul.f32.gmra.mxu0 %v175
      %v279 = vpop.f32.mrf.mxu0
      %v280 = vadd.f32 %v260, %v279
      %281 = vdwg.mxu0
      %282 = vmatpush.msra.mxu0 %v225
      %283 = vmatpush.msra.mxu0 %v224
      %284 = vmatpush.msra.mxu0 %v223
      %285 = vmatpush.msra.mxu0 %v222
      %286 = vmatpush.msra.mxu0 %v221
      %287 = vmatpush.msra.mxu0 %v220
      %288 = vmatpush.msra.mxu0 %v219
      %289 = vmatpush.msra.mxu0 %v218
      %290 = vmatpush.msra.mxu0 %v217
      %291 = vmatpush.msra.mxu0 %v216
      %292 = vmatpush.msra.mxu0 %v215
      %293 = vmatpush.msra.mxu0 %v214
      %294 = vmatpush.msra.mxu0 %v213
      %295 = vmatpush.msra.mxu0 %v212
      %296 = vmatpush.msra.mxu0 %v211
      %297 = vmatpush.msra.mxu0 %v210
      %298 = vmatmul.f32.gmra.mxu0 %v176
      %v299 = vpop.f32.mrf.mxu0
      %v300 = vadd.f32 %v280, %v299
      %301 = vdwg.mxu0
      %302 = vmatpush.msra.mxu0 %v241
      %303 = vmatpush.msra.mxu0 %v240
      %304 = vmatpush.msra.mxu0 %v239
      %305 = vmatpush.msra.mxu0 %v238
      %306 = vmatpush.msra.mxu0 %v237
      %307 = vmatpush.msra.mxu0 %v236
      %308 = vmatpush.msra.mxu0 %v235
      %309 = vmatpush.msra.mxu0 %v234
      %310 = vmatpush.msra.mxu0 %v233
      %311 = vmatpush.msra.mxu0 %v232
      %312 = vmatpush.msra.mxu0 %v231
      %313 = vmatpush.msra.mxu0 %v230
      %314 = vmatpush.msra.mxu0 %v229
      %315 = vmatpush.msra.mxu0 %v228
      %316 = vmatpush.msra.mxu0 %v227
      %317 = vmatpush.msra.mxu0 %v226
      %318 = vmatmul.f32.gmra.mxu0 %v177
      %v319 = vpop.f32.mrf.mxu0
      %v320 = vadd.f32 %v300, %v319
      %321 = vdwg.mxu0
      %v323 = vrot.slane %v320, 2
      %v325 = vadd.f32 %v320, %v323
      %v326 = vxor.u32 %v325, 2147483648
      %v327 = vmul.f32 %v326, 1.442695
      %v328 = vpow.pop %v327
      %v329 = vadd.f32 %v328, 1.0
      %v330 = vrcp.pop %v329
      %v331 = vmul.f32 %v329, %v330
      %v332 = vsub.f32 1.0, %v331
      %v333 = vmul.f32 %v330, %v332
      %v334 = vadd.f32 %v330, %v333
      %vm335 = vweird.f32 %v329
      %vm336 = vweird.f32 %v330
      %vm337 = vmor %vm335, %vm336
      %v338 = vsel %vm337, %v330, %v334
      %v339 = vand.u32 2147483647, %v329
      %vm340 = vcmp.eq.f32.partialorder %v339, 8.507059e+37
      %v341 = vand.u32 %v329, 2147483648
      %v342 = vor.u32 1.1754944e-38, %v341
      %v343 = vsel %vm340, %v342, %v338
      %v344 = vmul.f32 1.0, %v343
      %345 = vst.msk [vmem:[#allocation4] sm:$0x3] %vm42, %v344
    $region21: #{tpu_custom_call.1} parent=1 // pred_fallthru
      _
    // Predicated region
    $region22: #{tpu_custom_call.1} parent=1 // pred_check
      _
    $region23: #{tpu_custom_call.1} parent=1 // pred_check_branch
      %347 = sbr.rel (0) target = $region25
    $region24: #{tpu_custom_call.1} parent=1 // pred_region
      %349 = vsyncadd [#allocation5], 0
      %s351 = sshll.u32 [#allocation4], 4
      %s352 = int_to_ptr.vmem [resolvable:$true] %s351
      %s353 = sshll.u32 %s3, 4
      %s354 = int_to_ptr.hbm [resolvable:$true] %s353
      %356 = dma.vmem_to_hbm [thread:$0]  %s352, 32, %s354, [#allocation5]
    $region25: #{tpu_custom_call.1} parent=1 // pred_fallthru
      _
    // Predicated region
    $region26: #{tpu_custom_call.1} parent=1 // pred_check
      _
    $region27: #{tpu_custom_call.1} parent=1 // pred_check_branch
      %358 = sbr.rel (0) target = $region29
    $region28: #{tpu_custom_call.1} parent=1 // pred_region
      %360 = dma.done [#allocation5], 32
    $region29: #{tpu_custom_call.1} parent=1 // pred_fallthru
      _
    %361 = vsyncpa [#allocation5], 1

</llo_original>
